<compile_context>
chip_gen: v6e
topology: v6e:2x2x1
jax: 0.10.0
libtpu: 0.0.40
codegen_flags: <defaults>
</compile_context>

<pallas_src>
import functools

import jax
import jax.numpy as jnp
from jax.experimental import pallas as pl
from jax.experimental.pallas import tpu as pltpu

INPUT_DIM = 3
HIDDEN_DIM = 48
LATENT_DIM = 1
KSIZE = 3                       # conv1d kernel size

KC = KSIZE * INPUT_DIM          # 9 = flattened conv window (k, ci)
# packed parameter layout (rows of a (PACK_ROWS, HIDDEN_DIM) array);
# offsets kept 8-sublane aligned where it matters.
WC_OFF = 0                      # rows [0, 9):   conv weight (KC, H)
WH_OFF = 16                     # rows [16, 64): hidden weight (H, H)
BH_ROW = WH_OFF + HIDDEN_DIM    # row 64: hidden bias (conv bias folded in)
WL_ROW = BH_ROW + 1             # row 65: latent weight (H,)
BL_ROW = WL_ROW + 1             # row 66, col 0: latent bias
PACK_ROWS = 72                  # padded to a multiple of 8


def _round_up(x, m):
    return ((x + m - 1) // m) * m


def encoder_conv1_kernel(xw_ref, w_ref, o_ref):
    """xw_ref: (TB, (L-2)*KC) im2col windows; w_ref: (PACK_ROWS, H) packed params."""
    xw = xw_ref[...]                                    # (TB, T*KC) f32
    wc = w_ref[WC_OFF:WC_OFF + KC, :]                   # (KC, H)
    wh = w_ref[WH_OFF:WH_OFF + HIDDEN_DIM, :]           # (H, H)
    bh = w_ref[BH_ROW:BH_ROW + 1, :]                    # (1, H)  (conv bias folded)
    wl = w_ref[WL_ROW:WL_ROW + 1, :]                    # (1, H)
    bl = w_ref[BL_ROW:BL_ROW + 1, 0:1]                  # (1, 1)

    num_t = xw.shape[1] // KC                           # static (= L - 2)

    # Conv1d + max over time: running max over per-window MXU dots.
    m = jnp.dot(xw[:, 0:KC], wc, preferred_element_type=jnp.float32)
    for t in range(1, num_t):
        c = jnp.dot(xw[:, t * KC:(t + 1) * KC], wc,
                    preferred_element_type=jnp.float32)
        m = jnp.maximum(m, c)                           # (TB, H)

    # Hidden Linear + ReLU (conv bias already folded into bh).
    h = jnp.maximum(jnp.dot(m, wh, preferred_element_type=jnp.float32) + bh, 0.0)

    # Latent Linear (out dim 1): VPU mul + lane reduce instead of an N=1 matmul.
    out = jnp.sum(h * wl, axis=-1, keepdims=True) + bl  # (TB, 1)
    o_ref[...] = out.astype(o_ref.dtype)


def pack_params(params):
    """Fold + pack all parameters into one (PACK_ROWS, HIDDEN_DIM) array."""
    w = jnp.zeros((PACK_ROWS, HIDDEN_DIM), jnp.float32)
    w = w.at[WC_OFF:WC_OFF + KC, :].set(
        params["w_conv"].reshape(KC, HIDDEN_DIM))
    w = w.at[WH_OFF:WH_OFF + HIDDEN_DIM, :].set(params["w_h"])
    # max_t(conv_t + b_conv) = max_t(conv_t) + b_conv, so fold b_conv into the
    # hidden-layer bias: b_h' = b_h + b_conv @ W_h.
    bh_eff = params["b_h"] + params["b_conv"] @ params["w_h"]
    w = w.at[BH_ROW, :].set(bh_eff)
    w = w.at[WL_ROW, :].set(params["w_l"])
    w = w.at[BL_ROW, 0].set(params["b_l"])
    return w


@jax.jit
def encoder_conv1_forward(x, params):
    """x: (B, L, INPUT_DIM) float32 (same layout the PyTorch forward expects)."""
    B, L, C = x.shape
    assert C == INPUT_DIM and L >= KSIZE
    T = L - (KSIZE - 1)

    # im2col (layout plumbing, host/XLA side): window t = [x[t], x[t+1], x[t+2]]
    # flattened in (k, channel) order -> lane-dense (B, T*KC) slab.
    xw = jnp.concatenate(
        [x[:, 0:T, :], x[:, 1:T + 1, :], x[:, 2:T + 2, :]], axis=-1
    ).reshape(B, T * KC)

    packed = pack_params(params)

    tile_b = min(512, _round_up(B, 8))
    b_pad = _round_up(B, tile_b)
    if b_pad != B:
        xw = jnp.pad(xw, ((0, b_pad - B), (0, 0)))

    out = pl.pallas_call(
        encoder_conv1_kernel,
        out_shape=jax.ShapeDtypeStruct((b_pad, LATENT_DIM), jnp.float32),
        grid_spec=pltpu.PrefetchScalarGridSpec(
            num_scalar_prefetch=0,
            grid=(b_pad // tile_b,),
            in_specs=[
                pl.BlockSpec((tile_b, T * KC), lambda i: (i, 0)),
                pl.BlockSpec((PACK_ROWS, HIDDEN_DIM), lambda i: (0, 0)),
            ],
            out_specs=pl.BlockSpec((tile_b, LATENT_DIM), lambda i: (i, 0)),
        ),
        compiler_params=pltpu.CompilerParams(
            dimension_semantics=("parallel",)),
    )(xw, packed)
    return out[:B]


def init_params(key):
    """Deterministic init matching the PyTorch layer shapes.
    w_conv is stored as (k, in_ch, out_ch); linear weights as (in, out)."""
    k1, k2, k3, k4, k5, k6 = jax.random.split(key, 6)
    bc = 1.0 / jnp.sqrt(float(INPUT_DIM * KSIZE))
    bh = 1.0 / jnp.sqrt(float(HIDDEN_DIM))
    return {
        "w_conv": jax.random.uniform(k1, (KSIZE, INPUT_DIM, HIDDEN_DIM),
                                     jnp.float32, -bc, bc),
        "b_conv": jax.random.uniform(k2, (HIDDEN_DIM,), jnp.float32, -bc, bc),
        "w_h": jax.random.uniform(k3, (HIDDEN_DIM, HIDDEN_DIM),
                                  jnp.float32, -bh, bh),
        "b_h": jax.random.uniform(k4, (HIDDEN_DIM,), jnp.float32, -bh, bh),
        "w_l": jax.random.uniform(k5, (HIDDEN_DIM,), jnp.float32, -bh, bh),
        "b_l": jax.random.uniform(k6, (), jnp.float32, -bh, bh),
    }


if __name__ == "__main__":
    key = jax.random.PRNGKey(0)
    pkey, xkey = jax.random.split(key)
    params = init_params(pkey)

    B, L = 8, 16
    x = jax.random.normal(xkey, (B, L, INPUT_DIM), jnp.float32)

    out = encoder_conv1_forward(x, params)
    out = jax.block_until_ready(out)

    # Plain-JAX reference (PyTorch semantics: permute -> conv1d -> max -> MLP).
    T = L - (KSIZE - 1)
    windows = jnp.stack([x[:, 0:T, :], x[:, 1:T + 1, :], x[:, 2:T + 2, :]],
                        axis=2)                                  # (B, T, K, C)
    conv = jnp.einsum("btkc,kch->bth", windows, params["w_conv"]) \
        + params["b_conv"]                                       # (B, T, H)
    m = conv.max(axis=1)                                         # (B, H)
    h = jnp.maximum(m @ params["w_h"] + params["b_h"], 0.0)      # (B, H)
    ref = h @ params["w_l"][:, None] + params["b_l"]             # (B, 1)

    assert out.shape == (B, LATENT_DIM)
    assert jnp.allclose(out, ref, atol=1e-4, rtol=1e-4)
    print("KERNEL_OK")
</pallas_src>

<mosaic_0001>
module attributes {stable_mosaic.version = 11 : i64} {
  func.func @encoder_conv1_kernel(%arg0: i32, %arg1: memref<8x126xf32, #tpu.memory_space<vmem>>, %arg2: memref<72x48xf32, #tpu.memory_space<vmem>>, %arg3: memref<8x1xf32, #tpu.memory_space<vmem>>) attributes {dimension_semantics = [#tpu.dimension_semantics<parallel>], iteration_bounds = array<i64: 1>, scalar_prefetch = 0 : i64, scratch_operands = 0 : i64, tpu.core_type = #tpu.core_type<tc>, window_params = [{transform_indices = @transform_0, window_bounds = array<i64: 8, 126>}, {pipeline_mode = #tpu.pipeline_mode<synchronous>, transform_indices = @transform_1, window_bounds = array<i64: 72, 48>}, {transform_indices = @transform_2, window_bounds = array<i64: 8, 1>}]} {
    %c0 = arith.constant 0 : index
    %c0_0 = arith.constant 0 : index
    %0 = vector.load %arg1[%c0, %c0_0] : memref<8x126xf32, #tpu.memory_space<vmem>>, vector<8x126xf32>
    %c0_1 = arith.constant 0 : index
    %c0_2 = arith.constant 0 : index
    %1 = vector.load %arg2[%c0_1, %c0_2] : memref<72x48xf32, #tpu.memory_space<vmem>>, vector<9x48xf32>
    %c16 = arith.constant 16 : index
    %c0_3 = arith.constant 0 : index
    %2 = vector.load %arg2[%c16, %c0_3] : memref<72x48xf32, #tpu.memory_space<vmem>>, vector<48x48xf32>
    %c64 = arith.constant 64 : index
    %c0_4 = arith.constant 0 : index
    %3 = vector.load %arg2[%c64, %c0_4] : memref<72x48xf32, #tpu.memory_space<vmem>>, vector<1x48xf32>
    %c65 = arith.constant 65 : index
    %c0_5 = arith.constant 0 : index
    %4 = vector.load %arg2[%c65, %c0_5] : memref<72x48xf32, #tpu.memory_space<vmem>>, vector<1x48xf32>
    %c66 = arith.constant 66 : index
    %c0_6 = arith.constant 0 : index
    %5 = vector.load %arg2[%c66, %c0_6] : memref<72x48xf32, #tpu.memory_space<vmem>>, vector<1x1xf32>
    %6 = vector.extract_strided_slice %0 {offsets = [0, 0], sizes = [8, 9], strides = [1, 1]} : vector<8x126xf32> to vector<8x9xf32>
    %cst = arith.constant dense<0.000000e+00> : vector<8x48xf32>
    %7 = tpu.matmul %6, %1, %cst {dimension_numbers = #tpu.dot_dimension_numbers<[1], [0], [0], [1], [0, 0, 1, 1], [], []>} : vector<8x9xf32>, vector<9x48xf32>, vector<8x48xf32> -> vector<8x48xf32>
    %8 = vector.extract_strided_slice %0 {offsets = [0, 9], sizes = [8, 9], strides = [1, 1]} : vector<8x126xf32> to vector<8x9xf32>
    %cst_7 = arith.constant dense<0.000000e+00> : vector<8x48xf32>
    %9 = tpu.matmul %8, %1, %cst_7 {dimension_numbers = #tpu.dot_dimension_numbers<[1], [0], [0], [1], [0, 0, 1, 1], [], []>} : vector<8x9xf32>, vector<9x48xf32>, vector<8x48xf32> -> vector<8x48xf32>
    %10 = arith.maximumf %7, %9 : vector<8x48xf32>
    %11 = vector.extract_strided_slice %0 {offsets = [0, 18], sizes = [8, 9], strides = [1, 1]} : vector<8x126xf32> to vector<8x9xf32>
    %cst_8 = arith.constant dense<0.000000e+00> : vector<8x48xf32>
    %12 = tpu.matmul %11, %1, %cst_8 {dimension_numbers = #tpu.dot_dimension_numbers<[1], [0], [0], [1], [0, 0, 1, 1], [], []>} : vector<8x9xf32>, vector<9x48xf32>, vector<8x48xf32> -> vector<8x48xf32>
    %13 = arith.maximumf %10, %12 : vector<8x48xf32>
    %14 = vector.extract_strided_slice %0 {offsets = [0, 27], sizes = [8, 9], strides = [1, 1]} : vector<8x126xf32> to vector<8x9xf32>
    %cst_9 = arith.constant dense<0.000000e+00> : vector<8x48xf32>
    %15 = tpu.matmul %14, %1, %cst_9 {dimension_numbers = #tpu.dot_dimension_numbers<[1], [0], [0], [1], [0, 0, 1, 1], [], []>} : vector<8x9xf32>, vector<9x48xf32>, vector<8x48xf32> -> vector<8x48xf32>
    %16 = arith.maximumf %13, %15 : vector<8x48xf32>
    %17 = vector.extract_strided_slice %0 {offsets = [0, 36], sizes = [8, 9], strides = [1, 1]} : vector<8x126xf32> to vector<8x9xf32>
    %cst_10 = arith.constant dense<0.000000e+00> : vector<8x48xf32>
    %18 = tpu.matmul %17, %1, %cst_10 {dimension_numbers = #tpu.dot_dimension_numbers<[1], [0], [0], [1], [0, 0, 1, 1], [], []>} : vector<8x9xf32>, vector<9x48xf32>, vector<8x48xf32> -> vector<8x48xf32>
    %19 = arith.maximumf %16, %18 : vector<8x48xf32>
    %20 = vector.extract_strided_slice %0 {offsets = [0, 45], sizes = [8, 9], strides = [1, 1]} : vector<8x126xf32> to vector<8x9xf32>
    %cst_11 = arith.constant dense<0.000000e+00> : vector<8x48xf32>
    %21 = tpu.matmul %20, %1, %cst_11 {dimension_numbers = #tpu.dot_dimension_numbers<[1], [0], [0], [1], [0, 0, 1, 1], [], []>} : vector<8x9xf32>, vector<9x48xf32>, vector<8x48xf32> -> vector<8x48xf32>
    %22 = arith.maximumf %19, %21 : vector<8x48xf32>
    %23 = vector.extract_strided_slice %0 {offsets = [0, 54], sizes = [8, 9], strides = [1, 1]} : vector<8x126xf32> to vector<8x9xf32>
    %cst_12 = arith.constant dense<0.000000e+00> : vector<8x48xf32>
    %24 = tpu.matmul %23, %1, %cst_12 {dimension_numbers = #tpu.dot_dimension_numbers<[1], [0], [0], [1], [0, 0, 1, 1], [], []>} : vector<8x9xf32>, vector<9x48xf32>, vector<8x48xf32> -> vector<8x48xf32>
    %25 = arith.maximumf %22, %24 : vector<8x48xf32>
    %26 = vector.extract_strided_slice %0 {offsets = [0, 63], sizes = [8, 9], strides = [1, 1]} : vector<8x126xf32> to vector<8x9xf32>
    %cst_13 = arith.constant dense<0.000000e+00> : vector<8x48xf32>
    %27 = tpu.matmul %26, %1, %cst_13 {dimension_numbers = #tpu.dot_dimension_numbers<[1], [0], [0], [1], [0, 0, 1, 1], [], []>} : vector<8x9xf32>, vector<9x48xf32>, vector<8x48xf32> -> vector<8x48xf32>
    %28 = arith.maximumf %25, %27 : vector<8x48xf32>
    %29 = vector.extract_strided_slice %0 {offsets = [0, 72], sizes = [8, 9], strides = [1, 1]} : vector<8x126xf32> to vector<8x9xf32>
    %cst_14 = arith.constant dense<0.000000e+00> : vector<8x48xf32>
    %30 = tpu.matmul %29, %1, %cst_14 {dimension_numbers = #tpu.dot_dimension_numbers<[1], [0], [0], [1], [0, 0, 1, 1], [], []>} : vector<8x9xf32>, vector<9x48xf32>, vector<8x48xf32> -> vector<8x48xf32>
    %31 = arith.maximumf %28, %30 : vector<8x48xf32>
    %32 = vector.extract_strided_slice %0 {offsets = [0, 81], sizes = [8, 9], strides = [1, 1]} : vector<8x126xf32> to vector<8x9xf32>
    %cst_15 = arith.constant dense<0.000000e+00> : vector<8x48xf32>
    %33 = tpu.matmul %32, %1, %cst_15 {dimension_numbers = #tpu.dot_dimension_numbers<[1], [0], [0], [1], [0, 0, 1, 1], [], []>} : vector<8x9xf32>, vector<9x48xf32>, vector<8x48xf32> -> vector<8x48xf32>
    %34 = arith.maximumf %31, %33 : vector<8x48xf32>
    %35 = vector.extract_strided_slice %0 {offsets = [0, 90], sizes = [8, 9], strides = [1, 1]} : vector<8x126xf32> to vector<8x9xf32>
    %cst_16 = arith.constant dense<0.000000e+00> : vector<8x48xf32>
    %36 = tpu.matmul %35, %1, %cst_16 {dimension_numbers = #tpu.dot_dimension_numbers<[1], [0], [0], [1], [0, 0, 1, 1], [], []>} : vector<8x9xf32>, vector<9x48xf32>, vector<8x48xf32> -> vector<8x48xf32>
    %37 = arith.maximumf %34, %36 : vector<8x48xf32>
    %38 = vector.extract_strided_slice %0 {offsets = [0, 99], sizes = [8, 9], strides = [1, 1]} : vector<8x126xf32> to vector<8x9xf32>
    %cst_17 = arith.constant dense<0.000000e+00> : vector<8x48xf32>
    %39 = tpu.matmul %38, %1, %cst_17 {dimension_numbers = #tpu.dot_dimension_numbers<[1], [0], [0], [1], [0, 0, 1, 1], [], []>} : vector<8x9xf32>, vector<9x48xf32>, vector<8x48xf32> -> vector<8x48xf32>
    %40 = arith.maximumf %37, %39 : vector<8x48xf32>
    %41 = vector.extract_strided_slice %0 {offsets = [0, 108], sizes = [8, 9], strides = [1, 1]} : vector<8x126xf32> to vector<8x9xf32>
    %cst_18 = arith.constant dense<0.000000e+00> : vector<8x48xf32>
    %42 = tpu.matmul %41, %1, %cst_18 {dimension_numbers = #tpu.dot_dimension_numbers<[1], [0], [0], [1], [0, 0, 1, 1], [], []>} : vector<8x9xf32>, vector<9x48xf32>, vector<8x48xf32> -> vector<8x48xf32>
    %43 = arith.maximumf %40, %42 : vector<8x48xf32>
    %44 = vector.extract_strided_slice %0 {offsets = [0, 117], sizes = [8, 9], strides = [1, 1]} : vector<8x126xf32> to vector<8x9xf32>
    %cst_19 = arith.constant dense<0.000000e+00> : vector<8x48xf32>
    %45 = tpu.matmul %44, %1, %cst_19 {dimension_numbers = #tpu.dot_dimension_numbers<[1], [0], [0], [1], [0, 0, 1, 1], [], []>} : vector<8x9xf32>, vector<9x48xf32>, vector<8x48xf32> -> vector<8x48xf32>
    %46 = arith.maximumf %43, %45 : vector<8x48xf32>
    %cst_20 = arith.constant dense<0.000000e+00> : vector<8x48xf32>
    %47 = tpu.matmul %46, %2, %cst_20 {dimension_numbers = #tpu.dot_dimension_numbers<[1], [0], [0], [1], [0, 0, 1, 1], [], []>} : vector<8x48xf32>, vector<48x48xf32>, vector<8x48xf32> -> vector<8x48xf32>
    %48 = vector.broadcast %3 : vector<1x48xf32> to vector<8x48xf32>
    %49 = arith.addf %47, %48 : vector<8x48xf32>
    %cst_21 = arith.constant 0.000000e+00 : f32
    %50 = vector.broadcast %cst_21 : f32 to vector<8x48xf32>
    %51 = arith.maximumf %49, %50 : vector<8x48xf32>
    %52 = vector.broadcast %4 : vector<1x48xf32> to vector<8x48xf32>
    %53 = arith.mulf %51, %52 : vector<8x48xf32>
    %cst_22 = arith.constant dense<0.000000e+00> : vector<8xf32>
    %54 = vector.multi_reduction <add>, %53, %cst_22 [1] : vector<8x48xf32> to vector<8xf32>
    %55 = vector.shape_cast %54 : vector<8xf32> to vector<8x1xf32>
    %56 = vector.broadcast %5 : vector<1x1xf32> to vector<8x1xf32>
    %57 = arith.addf %55, %56 : vector<8x1xf32>
    %c0_23 = arith.constant 0 : index
    %c0_24 = arith.constant 0 : index
    %58 = vector.load %arg3[%c0_23, %c0_24] : memref<8x1xf32, #tpu.memory_space<vmem>>, vector<8x1xf32>
    tpu.vector_store %arg3[%c0_23, %c0_24], %57 {strides = array<i32>} : memref<8x1xf32, #tpu.memory_space<vmem>>, vector<8x1xf32>,
    return
  }
  func.func @transform_0(%arg0: i32) -> (i32, i32) {
    %c0_i32 = arith.constant 0 : i32
    %c0_i32_0 = arith.constant 0 : i32
    return %arg0, %c0_i32 : i32, i32
  }
  func.func @transform_1(%arg0: i32) -> (i32, i32) {
    %c0_i32 = arith.constant 0 : i32
    %c0_i32_0 = arith.constant 0 : i32
    %c0_i32_1 = arith.constant 0 : i32
    return %c0_i32, %c0_i32_0 : i32, i32
  }
  func.func @transform_2(%arg0: i32) -> (i32, i32) {
    %c0_i32 = arith.constant 0 : i32
    %c0_i32_0 = arith.constant 0 : i32
    return %arg0, %c0_i32 : i32, i32
  }
}

</mosaic_0001>

<llo_original>
// kernel: encoder_conv1_forward.1
$region0: #{encoder_conv1_forward.1}
  #allocation0 [shape = 'u32[]', space=smem, size = 0x4, offset = 0x4, fixed_abs, tag = 'smem constant byte address 0x4 - core index']
  #allocation1 [shape = 'u32[144,128]{1,0:T(1,128)}', space=vmem, size = 0x12000, scoped, tag = 'internal scratch']
  %s0 = inlined_call_operand.vmem [shape: f32[8,126], index: 0, kind: input, shape index: {}]
  %s1 = inlined_call_operand.vmem [shape: f32[72,48], index: 1, kind: input, shape index: {}]
  %s2 = inlined_call_operand.vmem [shape: f32[8,1], index: 2, kind: output, shape index: {}]
  %s3 = sld [smem:[#allocation0]]
  $region18: #{encoder_conv1_forward.1} parent=0
    _
  %s5 = ssub.s32 1, %s3
  %s6 = scalar_select 0, %s5, %s3
  // Predicated region
  $region2: #{encoder_conv1_forward.1} parent=0 // pred_check
    _
  $region3: #{encoder_conv1_forward.1} parent=0 // pred_check_branch
    %8 = sbr.rel (0) target = $region5
  $region4: #{encoder_conv1_forward.1} parent=0 // pred_region
    _
  $region5: #{encoder_conv1_forward.1} parent=0 // pred_fallthru
    _
  // Predicated region
  $region6: #{encoder_conv1_forward.1} parent=0 // pred_check
    _
  $region7: #{encoder_conv1_forward.1} parent=0 // pred_check_branch
    %10 = sbr.rel (0) target = $region9
  $region8: #{encoder_conv1_forward.1} parent=0 // pred_region
    _
  $region9: #{encoder_conv1_forward.1} parent=0 // pred_fallthru
    _
  %v11 = vld [vmem:[%s0] sm:$0xff]
  %v12 = vld [vmem:[%s1] sm:$0xff]
  %v13 = vld [vmem:[%s1 + $0x8] sm:$0x1]
  %v14 = vld [vmem:[%s1 + $0x10] sm:$0xff]
  %v15 = vld [vmem:[%s1 + $0x18] sm:$0xff]
  %v16 = vld [vmem:[%s1 + $0x20] sm:$0xff]
  %v17 = vld [vmem:[%s1 + $0x28] sm:$0xff]
  %v18 = vld [vmem:[%s1 + $0x30] sm:$0xff]
  %v19 = vld [vmem:[%s1 + $0x38] sm:$0xff]
  %v20 = vld [vmem:[%s1 + $0x40] sm:$0x1]
  %v21 = vld [vmem:[%s1 + $0x41] sm:$0x1]
  %v22 = vld [vmem:[%s1 + $0x42] sm:$0x1]
  %vm23 = vcmask 72704
  %v25 = vsel %vm23, %v11, 0
  %vm27 = vcmask 1040384
  %v29 = vsel %vm27, %v13, 0
  %31 = vmatprep.subr.mxu0 0.0
  %32 = vmatpush1.msra.mxu0 0.0
  %33 = vmatprep.subr.mxu0 0.0
  %34 = vmatpush1.msra.mxu0 0.0
  %35 = vmatprep.subr.mxu0 0.0
  %36 = vmatpush1.msra.mxu0 0.0
  %37 = vmatprep.subr.mxu0 0.0
  %38 = vmatpush1.msra.mxu0 0.0
  %39 = vmatprep.subr.mxu0 0.0
  %40 = vmatpush1.msra.mxu0 0.0
  %41 = vmatprep.subr.mxu0 0.0
  %42 = vmatpush1.msra.mxu0 0.0
  %43 = vmatprep.subr.mxu0 0.0
  %44 = vmatpush1.msra.mxu0 0.0
  %45 = vmatprep.subr.mxu0 0.0
  %46 = vmatpush1.msra.mxu0 0.0
  %47 = vmatprep.subr.mxu0 0.0
  %48 = vmatpush1.msra.mxu0 0.0
  %49 = vmatprep.subr.mxu0 0.0
  %50 = vmatpush1.msra.mxu0 0.0
  %51 = vmatprep.subr.mxu0 0.0
  %52 = vmatpush1.msra.mxu0 0.0
  %53 = vmatprep.subr.mxu0 0.0
  %54 = vmatpush1.msra.mxu0 0.0
  %55 = vmatprep.subr.mxu0 0.0
  %56 = vmatpush1.msra.mxu0 0.0
  %57 = vmatprep.subr.mxu0 0.0
  %58 = vmatpush1.msra.mxu0 0.0
  %59 = vmatprep.subr.mxu0 0.0
  %60 = vmatpush1.msra.mxu0 %v29
  %61 = vmatprep.subr.mxu0 0.0
  %62 = vmatpush1.msra.mxu0 %v12
  %63 = vmatprep.subr.mxu0 0.0
  %64 = vmatpush2.msra.mxu0 0.0
  %65 = vmatprep.subr.mxu0 0.0
  %66 = vmatpush2.msra.mxu0 0.0
  %67 = vmatprep.subr.mxu0 0.0
  %68 = vmatpush2.msra.mxu0 0.0
  %69 = vmatprep.subr.mxu0 0.0
  %70 = vmatpush2.msra.mxu0 0.0
  %71 = vmatprep.subr.mxu0 0.0
  %72 = vmatpush2.msra.mxu0 0.0
  %73 = vmatprep.subr.mxu0 0.0
  %74 = vmatpush2.msra.mxu0 0.0
  %75 = vmatprep.subr.mxu0 0.0
  %76 = vmatpush2.msra.mxu0 0.0
  %77 = vmatprep.subr.mxu0 0.0
  %78 = vmatpush2.msra.mxu0 0.0
  %79 = vmatprep.subr.mxu0 0.0
  %80 = vmatpush2.msra.mxu0 0.0
  %81 = vmatprep.subr.mxu0 0.0
  %82 = vmatpush2.msra.mxu0 0.0
  %83 = vmatprep.subr.mxu0 0.0
  %84 = vmatpush2.msra.mxu0 0.0
  %85 = vmatprep.subr.mxu0 0.0
  %86 = vmatpush2.msra.mxu0 0.0
  %87 = vmatprep.subr.mxu0 0.0
  %88 = vmatpush2.msra.mxu0 0.0
  %89 = vmatprep.subr.mxu0 0.0
  %90 = vmatpush2.msra.mxu0 0.0
  %91 = vmatprep.subr.mxu0 0.0
  %92 = vmatpush2.msra.mxu0 0.0
  %93 = vmatprep.subr.mxu0 0.0
  %94 = vmatpush2.msra.mxu0 0.0
  %95 = vmatprep.mubr.f32.mxu0 0.0
  %96 = vmatmul.mubr.f32.gmra.mxu0 %v25
  %v97 = vpop.f32.mrf.mxu0
  %v98 = vadd.f32 0.0, %v97
  %v99 = vpop.f32.mrf.mxu0
  %100 = vdwg.mxu0
  %101 = vrot.lane.b32.xlu0 %v11, 119
  %v102 = vpop.permute.xlu0 %101
  %v103 = vsel %vm23, %v102, 0
  %105 = vmatprep.subr.mxu0 0.0
  %106 = vmatpush1.msra.mxu0 0.0
  %107 = vmatprep.subr.mxu0 0.0
  %108 = vmatpush1.msra.mxu0 0.0
  %109 = vmatprep.subr.mxu0 0.0
  %110 = vmatpush1.msra.mxu0 0.0
  %111 = vmatprep.subr.mxu0 0.0
  %112 = vmatpush1.msra.mxu0 0.0
  %113 = vmatprep.subr.mxu0 0.0
  %114 = vmatpush1.msra.mxu0 0.0
  %115 = vmatprep.subr.mxu0 0.0
  %116 = vmatpush1.msra.mxu0 0.0
  %117 = vmatprep.subr.mxu0 0.0
  %118 = vmatpush1.msra.mxu0 0.0
  %119 = vmatprep.subr.mxu0 0.0
  %120 = vmatpush1.msra.mxu0 0.0
  %121 = vmatprep.subr.mxu0 0.0
  %122 = vmatpush1.msra.mxu0 0.0
  %123 = vmatprep.subr.mxu0 0.0
  %124 = vmatpush1.msra.mxu0 0.0
  %125 = vmatprep.subr.mxu0 0.0
  %126 = vmatpush1.msra.mxu0 0.0
  %127 = vmatprep.subr.mxu0 0.0
  %128 = vmatpush1.msra.mxu0 0.0
  %129 = vmatprep.subr.mxu0 0.0
  %130 = vmatpush1.msra.mxu0 0.0
  %131 = vmatprep.subr.mxu0 0.0
  %132 = vmatpush1.msra.mxu0 0.0
  %133 = vmatprep.subr.mxu0 0.0
  %134 = vmatpush1.msra.mxu0 %v29
  %135 = vmatprep.subr.mxu0 0.0
  %136 = vmatpush1.msra.mxu0 %v12
  %137 = vmatprep.subr.mxu0 0.0
  %138 = vmatpush2.msra.mxu0 0.0
  %139 = vmatprep.subr.mxu0 0.0
  %140 = vmatpush2.msra.mxu0 0.0
  %141 = vmatprep.subr.mxu0 0.0
  %142 = vmatpush2.msra.mxu0 0.0
  %143 = vmatprep.subr.mxu0 0.0
  %144 = vmatpush2.msra.mxu0 0.0
  %145 = vmatprep.subr.mxu0 0.0
  %146 = vmatpush2.msra.mxu0 0.0
  %147 = vmatprep.subr.mxu0 0.0
  %148 = vmatpush2.msra.mxu0 0.0
  %149 = vmatprep.subr.mxu0 0.0
  %150 = vmatpush2.msra.mxu0 0.0
  %151 = vmatprep.subr.mxu0 0.0
  %152 = vmatpush2.msra.mxu0 0.0
  %153 = vmatprep.subr.mxu0 0.0
  %154 = vmatpush2.msra.mxu0 0.0
  %155 = vmatprep.subr.mxu0 0.0
  %156 = vmatpush2.msra.mxu0 0.0
  %157 = vmatprep.subr.mxu0 0.0
  %158 = vmatpush2.msra.mxu0 0.0
  %159 = vmatprep.subr.mxu0 0.0
  %160 = vmatpush2.msra.mxu0 0.0
  %161 = vmatprep.subr.mxu0 0.0
  %162 = vmatpush2.msra.mxu0 0.0
  %163 = vmatprep.subr.mxu0 0.0
  %164 = vmatpush2.msra.mxu0 0.0
  %165 = vmatprep.subr.mxu0 0.0
  %166 = vmatpush2.msra.mxu0 0.0
  %167 = vmatprep.subr.mxu0 0.0
  %168 = vmatpush2.msra.mxu0 0.0
  %169 = vmatprep.mubr.f32.mxu0 0.0
  %170 = vmatmul.mubr.f32.gmra.mxu0 %v103
  %v171 = vpop.f32.mrf.mxu0
  %v172 = vadd.f32 0.0, %v171
  %v173 = vpop.f32.mrf.mxu0
  %174 = vdwg.mxu0
  %v175 = vmax.f32 %v98, %v172
  %176 = vrot.lane.b32.xlu0 %v11, 110
  %v177 = vpop.permute.xlu0 %176
  %v178 = vsel %vm23, %v177, 0
  %180 = vmatprep.subr.mxu0 0.0
  %181 = vmatpush1.msra.mxu0 0.0
  %182 = vmatprep.subr.mxu0 0.0
  %183 = vmatpush1.msra.mxu0 0.0
  %184 = vmatprep.subr.mxu0 0.0
  %185 = vmatpush1.msra.mxu0 0.0
  %186 = vmatprep.subr.mxu0 0.0
  %187 = vmatpush1.msra.mxu0 0.0
  %188 = vmatprep.subr.mxu0 0.0
  %189 = vmatpush1.msra.mxu0 0.0
  %190 = vmatprep.subr.mxu0 0.0
  %191 = vmatpush1.msra.mxu0 0.0
  %192 = vmatprep.subr.mxu0 0.0
  %193 = vmatpush1.msra.mxu0 0.0
  %194 = vmatprep.subr.mxu0 0.0
  %195 = vmatpush1.msra.mxu0 0.0
  %196 = vmatprep.subr.mxu0 0.0
  %197 = vmatpush1.msra.mxu0 0.0
  %198 = vmatprep.subr.mxu0 0.0
  %199 = vmatpush1.msra.mxu0 0.0
  %200 = vmatprep.subr.mxu0 0.0
  %201 = vmatpush1.msra.mxu0 0.0
  %202 = vmatprep.subr.mxu0 0.0
  %203 = vmatpush1.msra.mxu0 0.0
  %204 = vmatprep.subr.mxu0 0.0
  %205 = vmatpush1.msra.mxu0 0.0
  %206 = vmatprep.subr.mxu0 0.0
  %207 = vmatpush1.msra.mxu0 0.0
  %208 = vmatprep.subr.mxu0 0.0
  %209 = vmatpush1.msra.mxu0 %v29
  %210 = vmatprep.subr.mxu0 0.0
  %211 = vmatpush1.msra.mxu0 %v12
  %212 = vmatprep.subr.mxu0 0.0
  %213 = vmatpush2.msra.mxu0 0.0
  %214 = vmatprep.subr.mxu0 0.0
  %215 = vmatpush2.msra.mxu0 0.0
  %216 = vmatprep.subr.mxu0 0.0
  %217 = vmatpush2.msra.mxu0 0.0
  %218 = vmatprep.subr.mxu0 0.0
  %219 = vmatpush2.msra.mxu0 0.0
  %220 = vmatprep.subr.mxu0 0.0
  %221 = vmatpush2.msra.mxu0 0.0
  %222 = vmatprep.subr.mxu0 0.0
  %223 = vmatpush2.msra.mxu0 0.0
  %224 = vmatprep.subr.mxu0 0.0
  %225 = vmatpush2.msra.mxu0 0.0
  %226 = vmatprep.subr.mxu0 0.0
  %227 = vmatpush2.msra.mxu0 0.0
  %228 = vmatprep.subr.mxu0 0.0
  %229 = vmatpush2.msra.mxu0 0.0
  %230 = vmatprep.subr.mxu0 0.0
  %231 = vmatpush2.msra.mxu0 0.0
  %232 = vmatprep.subr.mxu0 0.0
  %233 = vmatpush2.msra.mxu0 0.0
  %234 = vmatprep.subr.mxu0 0.0
  %235 = vmatpush2.msra.mxu0 0.0
  %236 = vmatprep.subr.mxu0 0.0
  %237 = vmatpush2.msra.mxu0 0.0
  %238 = vmatprep.subr.mxu0 0.0
  %239 = vmatpush2.msra.mxu0 0.0
  %240 = vmatprep.subr.mxu0 0.0
  %241 = vmatpush2.msra.mxu0 0.0
  %242 = vmatprep.subr.mxu0 0.0
  %243 = vmatpush2.msra.mxu0 0.0
  %244 = vmatprep.mubr.f32.mxu0 0.0
  %245 = vmatmul.mubr.f32.gmra.mxu0 %v178
  %v246 = vpop.f32.mrf.mxu0
  %v247 = vadd.f32 0.0, %v246
  %v248 = vpop.f32.mrf.mxu0
  %249 = vdwg.mxu0
  %v250 = vmax.f32 %v175, %v247
  %251 = vrot.lane.b32.xlu0 %v11, 101
  %v252 = vpop.permute.xlu0 %251
  %v253 = vsel %vm23, %v252, 0
  %255 = vmatprep.subr.mxu0 0.0
  %256 = vmatpush1.msra.mxu0 0.0
  %257 = vmatprep.subr.mxu0 0.0
  %258 = vmatpush1.msra.mxu0 0.0
  %259 = vmatprep.subr.mxu0 0.0
  %260 = vmatpush1.msra.mxu0 0.0
  %261 = vmatprep.subr.mxu0 0.0
  %262 = vmatpush1.msra.mxu0 0.0
  %263 = vmatprep.subr.mxu0 0.0
  %264 = vmatpush1.msra.mxu0 0.0
  %265 = vmatprep.subr.mxu0 0.0
  %266 = vmatpush1.msra.mxu0 0.0
  %267 = vmatprep.subr.mxu0 0.0
  %268 = vmatpush1.msra.mxu0 0.0
  %269 = vmatprep.subr.mxu0 0.0
  %270 = vmatpush1.msra.mxu0 0.0
  %271 = vmatprep.subr.mxu0 0.0
  %272 = vmatpush1.msra.mxu0 0.0
  %273 = vmatprep.subr.mxu0 0.0
  %274 = vmatpush1.msra.mxu0 0.0
  %275 = vmatprep.subr.mxu0 0.0
  %276 = vmatpush1.msra.mxu0 0.0
  %277 = vmatprep.subr.mxu0 0.0
  %278 = vmatpush1.msra.mxu0 0.0
  %279 = vmatprep.subr.mxu0 0.0
  %280 = vmatpush1.msra.mxu0 0.0
  %281 = vmatprep.subr.mxu0 0.0
  %282 = vmatpush1.msra.mxu0 0.0
  %283 = vmatprep.subr.mxu0 0.0
  %284 = vmatpush1.msra.mxu0 %v29
  %285 = vmatprep.subr.mxu0 0.0
  %286 = vmatpush1.msra.mxu0 %v12
  %287 = vmatprep.subr.mxu0 0.0
  %288 = vmatpush2.msra.mxu0 0.0
  %289 = vmatprep.subr.mxu0 0.0
  %290 = vmatpush2.msra.mxu0 0.0
  %291 = vmatprep.subr.mxu0 0.0
  %292 = vmatpush2.msra.mxu0 0.0
  %293 = vmatprep.subr.mxu0 0.0
  %294 = vmatpush2.msra.mxu0 0.0
  %295 = vmatprep.subr.mxu0 0.0
  %296 = vmatpush2.msra.mxu0 0.0
  %297 = vmatprep.subr.mxu0 0.0
  %298 = vmatpush2.msra.mxu0 0.0
  %299 = vmatprep.subr.mxu0 0.0
  %300 = vmatpush2.msra.mxu0 0.0
  %301 = vmatprep.subr.mxu0 0.0
  %302 = vmatpush2.msra.mxu0 0.0
  %303 = vmatprep.subr.mxu0 0.0
  %304 = vmatpush2.msra.mxu0 0.0
  %305 = vmatprep.subr.mxu0 0.0
  %306 = vmatpush2.msra.mxu0 0.0
  %307 = vmatprep.subr.mxu0 0.0
  %308 = vmatpush2.msra.mxu0 0.0
  %309 = vmatprep.subr.mxu0 0.0
  %310 = vmatpush2.msra.mxu0 0.0
  %311 = vmatprep.subr.mxu0 0.0
  %312 = vmatpush2.msra.mxu0 0.0
  %313 = vmatprep.subr.mxu0 0.0
  %314 = vmatpush2.msra.mxu0 0.0
  %315 = vmatprep.subr.mxu0 0.0
  %316 = vmatpush2.msra.mxu0 0.0
  %317 = vmatprep.subr.mxu0 0.0
  %318 = vmatpush2.msra.mxu0 0.0
  %319 = vmatprep.mubr.f32.mxu0 0.0
  %320 = vmatmul.mubr.f32.gmra.mxu0 %v253
  %v321 = vpop.f32.mrf.mxu0
  %v322 = vadd.f32 0.0, %v321
  %v323 = vpop.f32.mrf.mxu0
  %324 = vdwg.mxu0
  %v325 = vmax.f32 %v250, %v322
  %326 = vrot.lane.b32.xlu0 %v11, 92
  %v327 = vpop.permute.xlu0 %326
  %v328 = vsel %vm23, %v327, 0
  %330 = vmatprep.subr.mxu0 0.0
  %331 = vmatpush1.msra.mxu0 0.0
  %332 = vmatprep.subr.mxu0 0.0
  %333 = vmatpush1.msra.mxu0 0.0
  %334 = vmatprep.subr.mxu0 0.0
  %335 = vmatpush1.msra.mxu0 0.0
  %336 = vmatprep.subr.mxu0 0.0
  %337 = vmatpush1.msra.mxu0 0.0
  %338 = vmatprep.subr.mxu0 0.0
  %339 = vmatpush1.msra.mxu0 0.0
  %340 = vmatprep.subr.mxu0 0.0
  %341 = vmatpush1.msra.mxu0 0.0
  %342 = vmatprep.subr.mxu0 0.0
  %343 = vmatpush1.msra.mxu0 0.0
  %344 = vmatprep.subr.mxu0 0.0
  %345 = vmatpush1.msra.mxu0 0.0
  %346 = vmatprep.subr.mxu0 0.0
  %347 = vmatpush1.msra.mxu0 0.0
  %348 = vmatprep.subr.mxu0 0.0
  %349 = vmatpush1.msra.mxu0 0.0
  %350 = vmatprep.subr.mxu0 0.0
  %351 = vmatpush1.msra.mxu0 0.0
  %352 = vmatprep.subr.mxu0 0.0
  %353 = vmatpush1.msra.mxu0 0.0
  %354 = vmatprep.subr.mxu0 0.0
  %355 = vmatpush1.msra.mxu0 0.0
  %356 = vmatprep.subr.mxu0 0.0
  %357 = vmatpush1.msra.mxu0 0.0
  %358 = vmatprep.subr.mxu0 0.0
  %359 = vmatpush1.msra.mxu0 %v29
  %360 = vmatprep.subr.mxu0 0.0
  %361 = vmatpush1.msra.mxu0 %v12
  %362 = vmatprep.subr.mxu0 0.0
  %363 = vmatpush2.msra.mxu0 0.0
  %364 = vmatprep.subr.mxu0 0.0
  %365 = vmatpush2.msra.mxu0 0.0
  %366 = vmatprep.subr.mxu0 0.0
  %367 = vmatpush2.msra.mxu0 0.0
  %368 = vmatprep.subr.mxu0 0.0
  %369 = vmatpush2.msra.mxu0 0.0
  %370 = vmatprep.subr.mxu0 0.0
  %371 = vmatpush2.msra.mxu0 0.0
  %372 = vmatprep.subr.mxu0 0.0
  %373 = vmatpush2.msra.mxu0 0.0
  %374 = vmatprep.subr.mxu0 0.0
  %375 = vmatpush2.msra.mxu0 0.0
  %376 = vmatprep.subr.mxu0 0.0
  %377 = vmatpush2.msra.mxu0 0.0
  %378 = vmatprep.subr.mxu0 0.0
  %379 = vmatpush2.msra.mxu0 0.0
  %380 = vmatprep.subr.mxu0 0.0
  %381 = vmatpush2.msra.mxu0 0.0
  %382 = vmatprep.subr.mxu0 0.0
  %383 = vmatpush2.msra.mxu0 0.0
  %384 = vmatprep.subr.mxu0 0.0
  %385 = vmatpush2.msra.mxu0 0.0
  %386 = vmatprep.subr.mxu0 0.0
  %387 = vmatpush2.msra.mxu0 0.0
  %388 = vmatprep.subr.mxu0 0.0
  %389 = vmatpush2.msra.mxu0 0.0
  %390 = vmatprep.subr.mxu0 0.0
  %391 = vmatpush2.msra.mxu0 0.0
  %392 = vmatprep.subr.mxu0 0.0
  %393 = vmatpush2.msra.mxu0 0.0
  %394 = vmatprep.mubr.f32.mxu0 0.0
  %395 = vmatmul.mubr.f32.gmra.mxu0 %v328
  %v396 = vpop.f32.mrf.mxu0
  %v397 = vadd.f32 0.0, %v396
  %v398 = vpop.f32.mrf.mxu0
  %399 = vdwg.mxu0
  %v400 = vmax.f32 %v325, %v397
  %401 = vrot.lane.b32.xlu0 %v11, 83
  %v402 = vpop.permute.xlu0 %401
  %v403 = vsel %vm23, %v402, 0
  %405 = vmatprep.subr.mxu0 0.0
  %406 = vmatpush1.msra.mxu0 0.0
  %407 = vmatprep.subr.mxu0 0.0
  %408 = vmatpush1.msra.mxu0 0.0
  %409 = vmatprep.subr.mxu0 0.0
  %410 = vmatpush1.msra.mxu0 0.0
  %411 = vmatprep.subr.mxu0 0.0
  %412 = vmatpush1.msra.mxu0 0.0
  %413 = vmatprep.subr.mxu0 0.0
  %414 = vmatpush1.msra.mxu0 0.0
  %415 = vmatprep.subr.mxu0 0.0
  %416 = vmatpush1.msra.mxu0 0.0
  %417 = vmatprep.subr.mxu0 0.0
  %418 = vmatpush1.msra.mxu0 0.0
  %419 = vmatprep.subr.mxu0 0.0
  %420 = vmatpush1.msra.mxu0 0.0
  %421 = vmatprep.subr.mxu0 0.0
  %422 = vmatpush1.msra.mxu0 0.0
  %423 = vmatprep.subr.mxu0 0.0
  %424 = vmatpush1.msra.mxu0 0.0
  %425 = vmatprep.subr.mxu0 0.0
  %426 = vmatpush1.msra.mxu0 0.0
  %427 = vmatprep.subr.mxu0 0.0
  %428 = vmatpush1.msra.mxu0 0.0
  %429 = vmatprep.subr.mxu0 0.0
  %430 = vmatpush1.msra.mxu0 0.0
  %431 = vmatprep.subr.mxu0 0.0
  %432 = vmatpush1.msra.mxu0 0.0
  %433 = vmatprep.subr.mxu0 0.0
  %434 = vmatpush1.msra.mxu0 %v29
  %435 = vmatprep.subr.mxu0 0.0
  %436 = vmatpush1.msra.mxu0 %v12
  %437 = vmatprep.subr.mxu0 0.0
  %438 = vmatpush2.msra.mxu0 0.0
  %439 = vmatprep.subr.mxu0 0.0
  %440 = vmatpush2.msra.mxu0 0.0
  %441 = vmatprep.subr.mxu0 0.0
  %442 = vmatpush2.msra.mxu0 0.0
  %443 = vmatprep.subr.mxu0 0.0
  %444 = vmatpush2.msra.mxu0 0.0
  %445 = vmatprep.subr.mxu0 0.0
  %446 = vmatpush2.msra.mxu0 0.0
  %447 = vmatprep.subr.mxu0 0.0
  %448 = vmatpush2.msra.mxu0 0.0
  %449 = vmatprep.subr.mxu0 0.0
  %450 = vmatpush2.msra.mxu0 0.0
  %451 = vmatprep.subr.mxu0 0.0
  %452 = vmatpush2.msra.mxu0 0.0
  %453 = vmatprep.subr.mxu0 0.0
  %454 = vmatpush2.msra.mxu0 0.0
  %455 = vmatprep.subr.mxu0 0.0
  %456 = vmatpush2.msra.mxu0 0.0
  %457 = vmatprep.subr.mxu0 0.0
  %458 = vmatpush2.msra.mxu0 0.0
  %459 = vmatprep.subr.mxu0 0.0
  %460 = vmatpush2.msra.mxu0 0.0
  %461 = vmatprep.subr.mxu0 0.0
  %462 = vmatpush2.msra.mxu0 0.0
  %463 = vmatprep.subr.mxu0 0.0
  %464 = vmatpush2.msra.mxu0 0.0
  %465 = vmatprep.subr.mxu0 0.0
  %466 = vmatpush2.msra.mxu0 0.0
  %467 = vmatprep.subr.mxu0 0.0
  %468 = vmatpush2.msra.mxu0 0.0
  %469 = vmatprep.mubr.f32.mxu0 0.0
  %470 = vmatmul.mubr.f32.gmra.mxu0 %v403
  %v471 = vpop.f32.mrf.mxu0
  %v472 = vadd.f32 0.0, %v471
  %v473 = vpop.f32.mrf.mxu0
  %474 = vdwg.mxu0
  %v475 = vmax.f32 %v400, %v472
  %476 = vrot.lane.b32.xlu0 %v11, 74
  %v477 = vpop.permute.xlu0 %476
  %v478 = vsel %vm23, %v477, 0
  %480 = vmatprep.subr.mxu0 0.0
  %481 = vmatpush1.msra.mxu0 0.0
  %482 = vmatprep.subr.mxu0 0.0
  %483 = vmatpush1.msra.mxu0 0.0
  %484 = vmatprep.subr.mxu0 0.0
  %485 = vmatpush1.msra.mxu0 0.0
  %486 = vmatprep.subr.mxu0 0.0
  %487 = vmatpush1.msra.mxu0 0.0
  %488 = vmatprep.subr.mxu0 0.0
  %489 = vmatpush1.msra.mxu0 0.0
  %490 = vmatprep.subr.mxu0 0.0
  %491 = vmatpush1.msra.mxu0 0.0
  %492 = vmatprep.subr.mxu0 0.0
  %493 = vmatpush1.msra.mxu0 0.0
  %494 = vmatprep.subr.mxu0 0.0
  %495 = vmatpush1.msra.mxu0 0.0
  %496 = vmatprep.subr.mxu0 0.0
  %497 = vmatpush1.msra.mxu0 0.0
  %498 = vmatprep.subr.mxu0 0.0
  %499 = vmatpush1.msra.mxu0 0.0
  %500 = vmatprep.subr.mxu0 0.0
  %501 = vmatpush1.msra.mxu0 0.0
  %502 = vmatprep.subr.mxu0 0.0
  %503 = vmatpush1.msra.mxu0 0.0
  %504 = vmatprep.subr.mxu0 0.0
  %505 = vmatpush1.msra.mxu0 0.0
  %506 = vmatprep.subr.mxu0 0.0
  %507 = vmatpush1.msra.mxu0 0.0
  %508 = vmatprep.subr.mxu0 0.0
  %509 = vmatpush1.msra.mxu0 %v29
  %510 = vmatprep.subr.mxu0 0.0
  %511 = vmatpush1.msra.mxu0 %v12
  %512 = vmatprep.subr.mxu0 0.0
  %513 = vmatpush2.msra.mxu0 0.0
  %514 = vmatprep.subr.mxu0 0.0
  %515 = vmatpush2.msra.mxu0 0.0
  %516 = vmatprep.subr.mxu0 0.0
  %517 = vmatpush2.msra.mxu0 0.0
  %518 = vmatprep.subr.mxu0 0.0
  %519 = vmatpush2.msra.mxu0 0.0
  %520 = vmatprep.subr.mxu0 0.0
  %521 = vmatpush2.msra.mxu0 0.0
  %522 = vmatprep.subr.mxu0 0.0
  %523 = vmatpush2.msra.mxu0 0.0
  %524 = vmatprep.subr.mxu0 0.0
  %525 = vmatpush2.msra.mxu0 0.0
  %526 = vmatprep.subr.mxu0 0.0
  %527 = vmatpush2.msra.mxu0 0.0
  %528 = vmatprep.subr.mxu0 0.0
  %529 = vmatpush2.msra.mxu0 0.0
  %530 = vmatprep.subr.mxu0 0.0
  %531 = vmatpush2.msra.mxu0 0.0
  %532 = vmatprep.subr.mxu0 0.0
  %533 = vmatpush2.msra.mxu0 0.0
  %534 = vmatprep.subr.mxu0 0.0
  %535 = vmatpush2.msra.mxu0 0.0
  %536 = vmatprep.subr.mxu0 0.0
  %537 = vmatpush2.msra.mxu0 0.0
  %538 = vmatprep.subr.mxu0 0.0
  %539 = vmatpush2.msra.mxu0 0.0
  %540 = vmatprep.subr.mxu0 0.0
  %541 = vmatpush2.msra.mxu0 0.0
  %542 = vmatprep.subr.mxu0 0.0
  %543 = vmatpush2.msra.mxu0 0.0
  %544 = vmatprep.mubr.f32.mxu0 0.0
  %545 = vmatmul.mubr.f32.gmra.mxu0 %v478
  %v546 = vpop.f32.mrf.mxu0
  %v547 = vadd.f32 0.0, %v546
  %v548 = vpop.f32.mrf.mxu0
  %549 = vdwg.mxu0
  %v550 = vmax.f32 %v475, %v547
  %551 = vrot.lane.b32.xlu0 %v11, 65
  %v552 = vpop.permute.xlu0 %551
  %v553 = vsel %vm23, %v552, 0
  %555 = vmatprep.subr.mxu0 0.0
  %556 = vmatpush1.msra.mxu0 0.0
  %557 = vmatprep.subr.mxu0 0.0
  %558 = vmatpush1.msra.mxu0 0.0
  %559 = vmatprep.subr.mxu0 0.0
  %560 = vmatpush1.msra.mxu0 0.0
  %561 = vmatprep.subr.mxu0 0.0
  %562 = vmatpush1.msra.mxu0 0.0
  %563 = vmatprep.subr.mxu0 0.0
  %564 = vmatpush1.msra.mxu0 0.0
  %565 = vmatprep.subr.mxu0 0.0
  %566 = vmatpush1.msra.mxu0 0.0
  %567 = vmatprep.subr.mxu0 0.0
  %568 = vmatpush1.msra.mxu0 0.0
  %569 = vmatprep.subr.mxu0 0.0
  %570 = vmatpush1.msra.mxu0 0.0
  %571 = vmatprep.subr.mxu0 0.0
  %572 = vmatpush1.msra.mxu0 0.0
  %573 = vmatprep.subr.mxu0 0.0
  %574 = vmatpush1.msra.mxu0 0.0
  %575 = vmatprep.subr.mxu0 0.0
  %576 = vmatpush1.msra.mxu0 0.0
  %577 = vmatprep.subr.mxu0 0.0
  %578 = vmatpush1.msra.mxu0 0.0
  %579 = vmatprep.subr.mxu0 0.0
  %580 = vmatpush1.msra.mxu0 0.0
  %581 = vmatprep.subr.mxu0 0.0
  %582 = vmatpush1.msra.mxu0 0.0
  %583 = vmatprep.subr.mxu0 0.0
  %584 = vmatpush1.msra.mxu0 %v29
  %585 = vmatprep.subr.mxu0 0.0
  %586 = vmatpush1.msra.mxu0 %v12
  %587 = vmatprep.subr.mxu0 0.0
  %588 = vmatpush2.msra.mxu0 0.0
  %589 = vmatprep.subr.mxu0 0.0
  %590 = vmatpush2.msra.mxu0 0.0
  %591 = vmatprep.subr.mxu0 0.0
  %592 = vmatpush2.msra.mxu0 0.0
  %593 = vmatprep.subr.mxu0 0.0
  %594 = vmatpush2.msra.mxu0 0.0
  %595 = vmatprep.subr.mxu0 0.0
  %596 = vmatpush2.msra.mxu0 0.0
  %597 = vmatprep.subr.mxu0 0.0
  %598 = vmatpush2.msra.mxu0 0.0
  %599 = vmatprep.subr.mxu0 0.0
  %600 = vmatpush2.msra.mxu0 0.0
  %601 = vmatprep.subr.mxu0 0.0
  %602 = vmatpush2.msra.mxu0 0.0
  %603 = vmatprep.subr.mxu0 0.0
  %604 = vmatpush2.msra.mxu0 0.0
  %605 = vmatprep.subr.mxu0 0.0
  %606 = vmatpush2.msra.mxu0 0.0
  %607 = vmatprep.subr.mxu0 0.0
  %608 = vmatpush2.msra.mxu0 0.0
  %609 = vmatprep.subr.mxu0 0.0
  %610 = vmatpush2.msra.mxu0 0.0
  %611 = vmatprep.subr.mxu0 0.0
  %612 = vmatpush2.msra.mxu0 0.0
  %613 = vmatprep.subr.mxu0 0.0
  %614 = vmatpush2.msra.mxu0 0.0
  %615 = vmatprep.subr.mxu0 0.0
  %616 = vmatpush2.msra.mxu0 0.0
  %617 = vmatprep.subr.mxu0 0.0
  %618 = vmatpush2.msra.mxu0 0.0
  %619 = vmatprep.mubr.f32.mxu0 0.0
  %620 = vmatmul.mubr.f32.gmra.mxu0 %v553
  %v621 = vpop.f32.mrf.mxu0
  %v622 = vadd.f32 0.0, %v621
  %v623 = vpop.f32.mrf.mxu0
  %624 = vdwg.mxu0
  %v625 = vmax.f32 %v550, %v622
  %626 = vrot.lane.b32.xlu0 %v11, 56
  %v627 = vpop.permute.xlu0 %626
  %v628 = vsel %vm23, %v627, 0
  %630 = vmatprep.subr.mxu0 0.0
  %631 = vmatpush1.msra.mxu0 0.0
  %632 = vmatprep.subr.mxu0 0.0
  %633 = vmatpush1.msra.mxu0 0.0
  %634 = vmatprep.subr.mxu0 0.0
  %635 = vmatpush1.msra.mxu0 0.0
  %636 = vmatprep.subr.mxu0 0.0
  %637 = vmatpush1.msra.mxu0 0.0
  %638 = vmatprep.subr.mxu0 0.0
  %639 = vmatpush1.msra.mxu0 0.0
  %640 = vmatprep.subr.mxu0 0.0
  %641 = vmatpush1.msra.mxu0 0.0
  %642 = vmatprep.subr.mxu0 0.0
  %643 = vmatpush1.msra.mxu0 0.0
  %644 = vmatprep.subr.mxu0 0.0
  %645 = vmatpush1.msra.mxu0 0.0
  %646 = vmatprep.subr.mxu0 0.0
  %647 = vmatpush1.msra.mxu0 0.0
  %648 = vmatprep.subr.mxu0 0.0
  %649 = vmatpush1.msra.mxu0 0.0
  %650 = vmatprep.subr.mxu0 0.0
  %651 = vmatpush1.msra.mxu0 0.0
  %652 = vmatprep.subr.mxu0 0.0
  %653 = vmatpush1.msra.mxu0 0.0
  %654 = vmatprep.subr.mxu0 0.0
  %655 = vmatpush1.msra.mxu0 0.0
  %656 = vmatprep.subr.mxu0 0.0
  %657 = vmatpush1.msra.mxu0 0.0
  %658 = vmatprep.subr.mxu0 0.0
  %659 = vmatpush1.msra.mxu0 %v29
  %660 = vmatprep.subr.mxu0 0.0
  %661 = vmatpush1.msra.mxu0 %v12
  %662 = vmatprep.subr.mxu0 0.0
  %663 = vmatpush2.msra.mxu0 0.0
  %664 = vmatprep.subr.mxu0 0.0
  %665 = vmatpush2.msra.mxu0 0.0
  %666 = vmatprep.subr.mxu0 0.0
  %667 = vmatpush2.msra.mxu0 0.0
  %668 = vmatprep.subr.mxu0 0.0
  %669 = vmatpush2.msra.mxu0 0.0
  %670 = vmatprep.subr.mxu0 0.0
  %671 = vmatpush2.msra.mxu0 0.0
  %672 = vmatprep.subr.mxu0 0.0
  %673 = vmatpush2.msra.mxu0 0.0
  %674 = vmatprep.subr.mxu0 0.0
  %675 = vmatpush2.msra.mxu0 0.0
  %676 = vmatprep.subr.mxu0 0.0
  %677 = vmatpush2.msra.mxu0 0.0
  %678 = vmatprep.subr.mxu0 0.0
  %679 = vmatpush2.msra.mxu0 0.0
  %680 = vmatprep.subr.mxu0 0.0
  %681 = vmatpush2.msra.mxu0 0.0
  %682 = vmatprep.subr.mxu0 0.0
  %683 = vmatpush2.msra.mxu0 0.0
  %684 = vmatprep.subr.mxu0 0.0
  %685 = vmatpush2.msra.mxu0 0.0
  %686 = vmatprep.subr.mxu0 0.0
  %687 = vmatpush2.msra.mxu0 0.0
  %688 = vmatprep.subr.mxu0 0.0
  %689 = vmatpush2.msra.mxu0 0.0
  %690 = vmatprep.subr.mxu0 0.0
  %691 = vmatpush2.msra.mxu0 0.0
  %692 = vmatprep.subr.mxu0 0.0
  %693 = vmatpush2.msra.mxu0 0.0
  %694 = vmatprep.mubr.f32.mxu0 0.0
  %695 = vmatmul.mubr.f32.gmra.mxu0 %v628
  %v696 = vpop.f32.mrf.mxu0
  %v697 = vadd.f32 0.0, %v696
  %v698 = vpop.f32.mrf.mxu0
  %699 = vdwg.mxu0
  %v700 = vmax.f32 %v625, %v697
  %701 = vrot.lane.b32.xlu0 %v11, 47
  %v702 = vpop.permute.xlu0 %701
  %v703 = vsel %vm23, %v702, 0
  %705 = vmatprep.subr.mxu0 0.0
  %706 = vmatpush1.msra.mxu0 0.0
  %707 = vmatprep.subr.mxu0 0.0
  %708 = vmatpush1.msra.mxu0 0.0
  %709 = vmatprep.subr.mxu0 0.0
  %710 = vmatpush1.msra.mxu0 0.0
  %711 = vmatprep.subr.mxu0 0.0
  %712 = vmatpush1.msra.mxu0 0.0
  %713 = vmatprep.subr.mxu0 0.0
  %714 = vmatpush1.msra.mxu0 0.0
  %715 = vmatprep.subr.mxu0 0.0
  %716 = vmatpush1.msra.mxu0 0.0
  %717 = vmatprep.subr.mxu0 0.0
  %718 = vmatpush1.msra.mxu0 0.0
  %719 = vmatprep.subr.mxu0 0.0
  %720 = vmatpush1.msra.mxu0 0.0
  %721 = vmatprep.subr.mxu0 0.0
  %722 = vmatpush1.msra.mxu0 0.0
  %723 = vmatprep.subr.mxu0 0.0
  %724 = vmatpush1.msra.mxu0 0.0
  %725 = vmatprep.subr.mxu0 0.0
  %726 = vmatpush1.msra.mxu0 0.0
  %727 = vmatprep.subr.mxu0 0.0
  %728 = vmatpush1.msra.mxu0 0.0
  %729 = vmatprep.subr.mxu0 0.0
  %730 = vmatpush1.msra.mxu0 0.0
  %731 = vmatprep.subr.mxu0 0.0
  %732 = vmatpush1.msra.mxu0 0.0
  %733 = vmatprep.subr.mxu0 0.0
  %734 = vmatpush1.msra.mxu0 %v29
  %735 = vmatprep.subr.mxu0 0.0
  %736 = vmatpush1.msra.mxu0 %v12
  %737 = vmatprep.subr.mxu0 0.0
  %738 = vmatpush2.msra.mxu0 0.0
  %739 = vmatprep.subr.mxu0 0.0
  %740 = vmatpush2.msra.mxu0 0.0
  %741 = vmatprep.subr.mxu0 0.0
  %742 = vmatpush2.msra.mxu0 0.0
  %743 = vmatprep.subr.mxu0 0.0
  %744 = vmatpush2.msra.mxu0 0.0
  %745 = vmatprep.subr.mxu0 0.0
  %746 = vmatpush2.msra.mxu0 0.0
  %747 = vmatprep.subr.mxu0 0.0
  %748 = vmatpush2.msra.mxu0 0.0
  %749 = vmatprep.subr.mxu0 0.0
  %750 = vmatpush2.msra.mxu0 0.0
  %751 = vmatprep.subr.mxu0 0.0
  %752 = vmatpush2.msra.mxu0 0.0
  %753 = vmatprep.subr.mxu0 0.0
  %754 = vmatpush2.msra.mxu0 0.0
  %755 = vmatprep.subr.mxu0 0.0
  %756 = vmatpush2.msra.mxu0 0.0
  %757 = vmatprep.subr.mxu0 0.0
  %758 = vmatpush2.msra.mxu0 0.0
  %759 = vmatprep.subr.mxu0 0.0
  %760 = vmatpush2.msra.mxu0 0.0
  %761 = vmatprep.subr.mxu0 0.0
  %762 = vmatpush2.msra.mxu0 0.0
  %763 = vmatprep.subr.mxu0 0.0
  %764 = vmatpush2.msra.mxu0 0.0
  %765 = vmatprep.subr.mxu0 0.0
  %766 = vmatpush2.msra.mxu0 0.0
  %767 = vmatprep.subr.mxu0 0.0
  %768 = vmatpush2.msra.mxu0 0.0
  %769 = vmatprep.mubr.f32.mxu0 0.0
  %770 = vmatmul.mubr.f32.gmra.mxu0 %v703
  %v771 = vpop.f32.mrf.mxu0
  %v772 = vadd.f32 0.0, %v771
  %v773 = vpop.f32.mrf.mxu0
  %774 = vdwg.mxu0
  %v775 = vmax.f32 %v700, %v772
  %776 = vrot.lane.b32.xlu0 %v11, 38
  %v777 = vpop.permute.xlu0 %776
  %v778 = vsel %vm23, %v777, 0
  %780 = vmatprep.subr.mxu0 0.0
  %781 = vmatpush1.msra.mxu0 0.0
  %782 = vmatprep.subr.mxu0 0.0
  %783 = vmatpush1.msra.mxu0 0.0
  %784 = vmatprep.subr.mxu0 0.0
  %785 = vmatpush1.msra.mxu0 0.0
  %786 = vmatprep.subr.mxu0 0.0
  %787 = vmatpush1.msra.mxu0 0.0
  %788 = vmatprep.subr.mxu0 0.0
  %789 = vmatpush1.msra.mxu0 0.0
  %790 = vmatprep.subr.mxu0 0.0
  %791 = vmatpush1.msra.mxu0 0.0
  %792 = vmatprep.subr.mxu0 0.0
  %793 = vmatpush1.msra.mxu0 0.0
  %794 = vmatprep.subr.mxu0 0.0
  %795 = vmatpush1.msra.mxu0 0.0
  %796 = vmatprep.subr.mxu0 0.0
  %797 = vmatpush1.msra.mxu0 0.0
  %798 = vmatprep.subr.mxu0 0.0
  %799 = vmatpush1.msra.mxu0 0.0
  %800 = vmatprep.subr.mxu0 0.0
  %801 = vmatpush1.msra.mxu0 0.0
  %802 = vmatprep.subr.mxu0 0.0
  %803 = vmatpush1.msra.mxu0 0.0
  %804 = vmatprep.subr.mxu0 0.0
  %805 = vmatpush1.msra.mxu0 0.0
  %806 = vmatprep.subr.mxu0 0.0
  %807 = vmatpush1.msra.mxu0 0.0
  %808 = vmatprep.subr.mxu0 0.0
  %809 = vmatpush1.msra.mxu0 %v29
  %810 = vmatprep.subr.mxu0 0.0
  %811 = vmatpush1.msra.mxu0 %v12
  %812 = vmatprep.subr.mxu0 0.0
  %813 = vmatpush2.msra.mxu0 0.0
  %814 = vmatprep.subr.mxu0 0.0
  %815 = vmatpush2.msra.mxu0 0.0
  %816 = vmatprep.subr.mxu0 0.0
  %817 = vmatpush2.msra.mxu0 0.0
  %818 = vmatprep.subr.mxu0 0.0
  %819 = vmatpush2.msra.mxu0 0.0
  %820 = vmatprep.subr.mxu0 0.0
  %821 = vmatpush2.msra.mxu0 0.0
  %822 = vmatprep.subr.mxu0 0.0
  %823 = vmatpush2.msra.mxu0 0.0
  %824 = vmatprep.subr.mxu0 0.0
  %825 = vmatpush2.msra.mxu0 0.0
  %826 = vmatprep.subr.mxu0 0.0
  %827 = vmatpush2.msra.mxu0 0.0
  %828 = vmatprep.subr.mxu0 0.0
  %829 = vmatpush2.msra.mxu0 0.0
  %830 = vmatprep.subr.mxu0 0.0
  %831 = vmatpush2.msra.mxu0 0.0
  %832 = vmatprep.subr.mxu0 0.0
  %833 = vmatpush2.msra.mxu0 0.0
  %834 = vmatprep.subr.mxu0 0.0
  %835 = vmatpush2.msra.mxu0 0.0
  %836 = vmatprep.subr.mxu0 0.0
  %837 = vmatpush2.msra.mxu0 0.0
  %838 = vmatprep.subr.mxu0 0.0
  %839 = vmatpush2.msra.mxu0 0.0
  %840 = vmatprep.subr.mxu0 0.0
  %841 = vmatpush2.msra.mxu0 0.0
  %842 = vmatprep.subr.mxu0 0.0
  %843 = vmatpush2.msra.mxu0 0.0
  %844 = vmatprep.mubr.f32.mxu0 0.0
  %845 = vmatmul.mubr.f32.gmra.mxu0 %v778
  %v846 = vpop.f32.mrf.mxu0
  %v847 = vadd.f32 0.0, %v846
  %v848 = vpop.f32.mrf.mxu0
  %849 = vdwg.mxu0
  %v850 = vmax.f32 %v775, %v847
  %851 = vrot.lane.b32.xlu0 %v11, 29
  %v852 = vpop.permute.xlu0 %851
  %v853 = vsel %vm23, %v852, 0
  %855 = vmatprep.subr.mxu0 0.0
  %856 = vmatpush1.msra.mxu0 0.0
  %857 = vmatprep.subr.mxu0 0.0
  %858 = vmatpush1.msra.mxu0 0.0
  %859 = vmatprep.subr.mxu0 0.0
  %860 = vmatpush1.msra.mxu0 0.0
  %861 = vmatprep.subr.mxu0 0.0
  %862 = vmatpush1.msra.mxu0 0.0
  %863 = vmatprep.subr.mxu0 0.0
  %864 = vmatpush1.msra.mxu0 0.0
  %865 = vmatprep.subr.mxu0 0.0
  %866 = vmatpush1.msra.mxu0 0.0
  %867 = vmatprep.subr.mxu0 0.0
  %868 = vmatpush1.msra.mxu0 0.0
  %869 = vmatprep.subr.mxu0 0.0
  %870 = vmatpush1.msra.mxu0 0.0
  %871 = vmatprep.subr.mxu0 0.0
  %872 = vmatpush1.msra.mxu0 0.0
  %873 = vmatprep.subr.mxu0 0.0
  %874 = vmatpush1.msra.mxu0 0.0
  %875 = vmatprep.subr.mxu0 0.0
  %876 = vmatpush1.msra.mxu0 0.0
  %877 = vmatprep.subr.mxu0 0.0
  %878 = vmatpush1.msra.mxu0 0.0
  %879 = vmatprep.subr.mxu0 0.0
  %880 = vmatpush1.msra.mxu0 0.0
  %881 = vmatprep.subr.mxu0 0.0
  %882 = vmatpush1.msra.mxu0 0.0
  %883 = vmatprep.subr.mxu0 0.0
  %884 = vmatpush1.msra.mxu0 %v29
  %885 = vmatprep.subr.mxu0 0.0
  %886 = vmatpush1.msra.mxu0 %v12
  %887 = vmatprep.subr.mxu0 0.0
  %888 = vmatpush2.msra.mxu0 0.0
  %889 = vmatprep.subr.mxu0 0.0
  %890 = vmatpush2.msra.mxu0 0.0
  %891 = vmatprep.subr.mxu0 0.0
  %892 = vmatpush2.msra.mxu0 0.0
  %893 = vmatprep.subr.mxu0 0.0
  %894 = vmatpush2.msra.mxu0 0.0
  %895 = vmatprep.subr.mxu0 0.0
  %896 = vmatpush2.msra.mxu0 0.0
  %897 = vmatprep.subr.mxu0 0.0
  %898 = vmatpush2.msra.mxu0 0.0
  %899 = vmatprep.subr.mxu0 0.0
  %900 = vmatpush2.msra.mxu0 0.0
  %901 = vmatprep.subr.mxu0 0.0
  %902 = vmatpush2.msra.mxu0 0.0
  %903 = vmatprep.subr.mxu0 0.0
  %904 = vmatpush2.msra.mxu0 0.0
  %905 = vmatprep.subr.mxu0 0.0
  %906 = vmatpush2.msra.mxu0 0.0
  %907 = vmatprep.subr.mxu0 0.0
  %908 = vmatpush2.msra.mxu0 0.0
  %909 = vmatprep.subr.mxu0 0.0
  %910 = vmatpush2.msra.mxu0 0.0
  %911 = vmatprep.subr.mxu0 0.0
  %912 = vmatpush2.msra.mxu0 0.0
  %913 = vmatprep.subr.mxu0 0.0
  %914 = vmatpush2.msra.mxu0 0.0
  %915 = vmatprep.subr.mxu0 0.0
  %916 = vmatpush2.msra.mxu0 0.0
  %917 = vmatprep.subr.mxu0 0.0
  %918 = vmatpush2.msra.mxu0 0.0
  %919 = vmatprep.mubr.f32.mxu0 0.0
  %920 = vmatmul.mubr.f32.gmra.mxu0 %v853
  %v921 = vpop.f32.mrf.mxu0
  %v922 = vadd.f32 0.0, %v921
  %v923 = vpop.f32.mrf.mxu0
  %924 = vdwg.mxu0
  %v925 = vmax.f32 %v850, %v922
  %926 = vrot.lane.b32.xlu0 %v11, 20
  %v927 = vpop.permute.xlu0 %926
  %v928 = vsel %vm23, %v927, 0
  %930 = vmatprep.subr.mxu0 0.0
  %931 = vmatpush1.msra.mxu0 0.0
  %932 = vmatprep.subr.mxu0 0.0
  %933 = vmatpush1.msra.mxu0 0.0
  %934 = vmatprep.subr.mxu0 0.0
  %935 = vmatpush1.msra.mxu0 0.0
  %936 = vmatprep.subr.mxu0 0.0
  %937 = vmatpush1.msra.mxu0 0.0
  %938 = vmatprep.subr.mxu0 0.0
  %939 = vmatpush1.msra.mxu0 0.0
  %940 = vmatprep.subr.mxu0 0.0
  %941 = vmatpush1.msra.mxu0 0.0
  %942 = vmatprep.subr.mxu0 0.0
  %943 = vmatpush1.msra.mxu0 0.0
  %944 = vmatprep.subr.mxu0 0.0
  %945 = vmatpush1.msra.mxu0 0.0
  %946 = vmatprep.subr.mxu0 0.0
  %947 = vmatpush1.msra.mxu0 0.0
  %948 = vmatprep.subr.mxu0 0.0
  %949 = vmatpush1.msra.mxu0 0.0
  %950 = vmatprep.subr.mxu0 0.0
  %951 = vmatpush1.msra.mxu0 0.0
  %952 = vmatprep.subr.mxu0 0.0
  %953 = vmatpush1.msra.mxu0 0.0
  %954 = vmatprep.subr.mxu0 0.0
  %955 = vmatpush1.msra.mxu0 0.0
  %956 = vmatprep.subr.mxu0 0.0
  %957 = vmatpush1.msra.mxu0 0.0
  %958 = vmatprep.subr.mxu0 0.0
  %959 = vmatpush1.msra.mxu0 %v29
  %960 = vmatprep.subr.mxu0 0.0
  %961 = vmatpush1.msra.mxu0 %v12
  %962 = vmatprep.subr.mxu0 0.0
  %963 = vmatpush2.msra.mxu0 0.0
  %964 = vmatprep.subr.mxu0 0.0
  %965 = vmatpush2.msra.mxu0 0.0
  %966 = vmatprep.subr.mxu0 0.0
  %967 = vmatpush2.msra.mxu0 0.0
  %968 = vmatprep.subr.mxu0 0.0
  %969 = vmatpush2.msra.mxu0 0.0
  %970 = vmatprep.subr.mxu0 0.0
  %971 = vmatpush2.msra.mxu0 0.0
  %972 = vmatprep.subr.mxu0 0.0
  %973 = vmatpush2.msra.mxu0 0.0
  %974 = vmatprep.subr.mxu0 0.0
  %975 = vmatpush2.msra.mxu0 0.0
  %976 = vmatprep.subr.mxu0 0.0
  %977 = vmatpush2.msra.mxu0 0.0
  %978 = vmatprep.subr.mxu0 0.0
  %979 = vmatpush2.msra.mxu0 0.0
  %980 = vmatprep.subr.mxu0 0.0
  %981 = vmatpush2.msra.mxu0 0.0
  %982 = vmatprep.subr.mxu0 0.0
  %983 = vmatpush2.msra.mxu0 0.0
  %984 = vmatprep.subr.mxu0 0.0
  %985 = vmatpush2.msra.mxu0 0.0
  %986 = vmatprep.subr.mxu0 0.0
  %987 = vmatpush2.msra.mxu0 0.0
  %988 = vmatprep.subr.mxu0 0.0
  %989 = vmatpush2.msra.mxu0 0.0
  %990 = vmatprep.subr.mxu0 0.0
  %991 = vmatpush2.msra.mxu0 0.0
  %992 = vmatprep.subr.mxu0 0.0
  %993 = vmatpush2.msra.mxu0 0.0
  %994 = vmatprep.mubr.f32.mxu0 0.0
  %995 = vmatmul.mubr.f32.gmra.mxu0 %v928
  %v996 = vpop.f32.mrf.mxu0
  %v997 = vadd.f32 0.0, %v996
  %v998 = vpop.f32.mrf.mxu0
  %999 = vdwg.mxu0
  %v1000 = vmax.f32 %v925, %v997
  %1001 = vrot.lane.b32.xlu0 %v11, 11
  %v1002 = vpop.permute.xlu0 %1001
  %v1003 = vsel %vm23, %v1002, 0
  %1005 = vmatprep.subr.mxu0 0.0
  %1006 = vmatpush1.msra.mxu0 0.0
  %1007 = vmatprep.subr.mxu0 0.0
  %1008 = vmatpush1.msra.mxu0 0.0
  %1009 = vmatprep.subr.mxu0 0.0
  %1010 = vmatpush1.msra.mxu0 0.0
  %1011 = vmatprep.subr.mxu0 0.0
  %1012 = vmatpush1.msra.mxu0 0.0
  %1013 = vmatprep.subr.mxu0 0.0
  %1014 = vmatpush1.msra.mxu0 0.0
  %1015 = vmatprep.subr.mxu0 0.0
  %1016 = vmatpush1.msra.mxu0 0.0
  %1017 = vmatprep.subr.mxu0 0.0
  %1018 = vmatpush1.msra.mxu0 0.0
  %1019 = vmatprep.subr.mxu0 0.0
  %1020 = vmatpush1.msra.mxu0 0.0
  %1021 = vmatprep.subr.mxu0 0.0
  %1022 = vmatpush1.msra.mxu0 0.0
  %1023 = vmatprep.subr.mxu0 0.0
  %1024 = vmatpush1.msra.mxu0 0.0
  %1025 = vmatprep.subr.mxu0 0.0
  %1026 = vmatpush1.msra.mxu0 0.0
  %1027 = vmatprep.subr.mxu0 0.0
  %1028 = vmatpush1.msra.mxu0 0.0
  %1029 = vmatprep.subr.mxu0 0.0
  %1030 = vmatpush1.msra.mxu0 0.0
  %1031 = vmatprep.subr.mxu0 0.0
  %1032 = vmatpush1.msra.mxu0 0.0
  %1033 = vmatprep.subr.mxu0 0.0
  %1034 = vmatpush1.msra.mxu0 %v29
  %1035 = vmatprep.subr.mxu0 0.0
  %1036 = vmatpush1.msra.mxu0 %v12
  %1037 = vmatprep.subr.mxu0 0.0
  %1038 = vmatpush2.msra.mxu0 0.0
  %1039 = vmatprep.subr.mxu0 0.0
  %1040 = vmatpush2.msra.mxu0 0.0
  %1041 = vmatprep.subr.mxu0 0.0
  %1042 = vmatpush2.msra.mxu0 0.0
  %1043 = vmatprep.subr.mxu0 0.0
  %1044 = vmatpush2.msra.mxu0 0.0
  %1045 = vmatprep.subr.mxu0 0.0
  %1046 = vmatpush2.msra.mxu0 0.0
  %1047 = vmatprep.subr.mxu0 0.0
  %1048 = vmatpush2.msra.mxu0 0.0
  %1049 = vmatprep.subr.mxu0 0.0
  %1050 = vmatpush2.msra.mxu0 0.0
  %1051 = vmatprep.subr.mxu0 0.0
  %1052 = vmatpush2.msra.mxu0 0.0
  %1053 = vmatprep.subr.mxu0 0.0
  %1054 = vmatpush2.msra.mxu0 0.0
  %1055 = vmatprep.subr.mxu0 0.0
  %1056 = vmatpush2.msra.mxu0 0.0
  %1057 = vmatprep.subr.mxu0 0.0
  %1058 = vmatpush2.msra.mxu0 0.0
  %1059 = vmatprep.subr.mxu0 0.0
  %1060 = vmatpush2.msra.mxu0 0.0
  %1061 = vmatprep.subr.mxu0 0.0
  %1062 = vmatpush2.msra.mxu0 0.0
  %1063 = vmatprep.subr.mxu0 0.0
  %1064 = vmatpush2.msra.mxu0 0.0
  %1065 = vmatprep.subr.mxu0 0.0
  %1066 = vmatpush2.msra.mxu0 0.0
  %1067 = vmatprep.subr.mxu0 0.0
  %1068 = vmatpush2.msra.mxu0 0.0
  %1069 = vmatprep.mubr.f32.mxu0 0.0
  %1070 = vmatmul.mubr.f32.gmra.mxu0 %v1003
  %v1071 = vpop.f32.mrf.mxu0
  %v1072 = vadd.f32 0.0, %v1071
  %v1073 = vpop.f32.mrf.mxu0
  %1074 = vdwg.mxu0
  %v1075 = vmax.f32 %v1000, %v1072
  %v1076 = vlaneseq
  %v1077 = vshrl.u32 %v1076, 7
  %v1078 = vsub.s32 0, %v1077
  %v1079 = vrot.slane %v20, %v1078
  %vm1080 = vcmask 392192
  %v1082 = vsel %vm1080, %v1075, 0
  %1084 = vmatprep.subr.mxu0 0.0
  %1085 = vmatpush1.msra.mxu0 0.0
  %1086 = vmatprep.subr.mxu0 0.0
  %1087 = vmatpush1.msra.mxu0 0.0
  %1088 = vmatprep.subr.mxu0 0.0
  %1089 = vmatpush1.msra.mxu0 0.0
  %1090 = vmatprep.subr.mxu0 0.0
  %1091 = vmatpush1.msra.mxu0 0.0
  %1092 = vmatprep.subr.mxu0 0.0
  %1093 = vmatpush1.msra.mxu0 0.0
  %1094 = vmatprep.subr.mxu0 0.0
  %1095 = vmatpush1.msra.mxu0 0.0
  %1096 = vmatprep.subr.mxu0 0.0
  %1097 = vmatpush1.msra.mxu0 0.0
  %1098 = vmatprep.subr.mxu0 0.0
  %1099 = vmatpush1.msra.mxu0 0.0
  %1100 = vmatprep.subr.mxu0 0.0
  %1101 = vmatpush1.msra.mxu0 0.0
  %1102 = vmatprep.subr.mxu0 0.0
  %1103 = vmatpush1.msra.mxu0 0.0
  %1104 = vmatprep.subr.mxu0 0.0
  %1105 = vmatpush1.msra.mxu0 %v19
  %1106 = vmatprep.subr.mxu0 0.0
  %1107 = vmatpush1.msra.mxu0 %v18
  %1108 = vmatprep.subr.mxu0 0.0
  %1109 = vmatpush1.msra.mxu0 %v17
  %1110 = vmatprep.subr.mxu0 0.0
  %1111 = vmatpush1.msra.mxu0 %v16
  %1112 = vmatprep.subr.mxu0 0.0
  %1113 = vmatpush1.msra.mxu0 %v15
  %1114 = vmatprep.subr.mxu0 0.0
  %1115 = vmatpush1.msra.mxu0 %v14
  %1116 = vmatprep.subr.mxu0 0.0
  %1117 = vmatpush2.msra.mxu0 0.0
  %1118 = vmatprep.subr.mxu0 0.0
  %1119 = vmatpush2.msra.mxu0 0.0
  %1120 = vmatprep.subr.mxu0 0.0
  %1121 = vmatpush2.msra.mxu0 0.0
  %1122 = vmatprep.subr.mxu0 0.0
  %1123 = vmatpush2.msra.mxu0 0.0
  %1124 = vmatprep.subr.mxu0 0.0
  %1125 = vmatpush2.msra.mxu0 0.0
  %1126 = vmatprep.subr.mxu0 0.0
  %1127 = vmatpush2.msra.mxu0 0.0
  %1128 = vmatprep.subr.mxu0 0.0
  %1129 = vmatpush2.msra.mxu0 0.0
  %1130 = vmatprep.subr.mxu0 0.0
  %1131 = vmatpush2.msra.mxu0 0.0
  %1132 = vmatprep.subr.mxu0 0.0
  %1133 = vmatpush2.msra.mxu0 0.0
  %1134 = vmatprep.subr.mxu0 0.0
  %1135 = vmatpush2.msra.mxu0 0.0
  %1136 = vmatprep.subr.mxu0 0.0
  %1137 = vmatpush2.msra.mxu0 0.0
  %1138 = vmatprep.subr.mxu0 0.0
  %1139 = vmatpush2.msra.mxu0 0.0
  %1140 = vmatprep.subr.mxu0 0.0
  %1141 = vmatpush2.msra.mxu0 0.0
  %1142 = vmatprep.subr.mxu0 0.0
  %1143 = vmatpush2.msra.mxu0 0.0
  %1144 = vmatprep.subr.mxu0 0.0
  %1145 = vmatpush2.msra.mxu0 0.0
  %1146 = vmatprep.subr.mxu0 0.0
  %1147 = vmatpush2.msra.mxu0 0.0
  %1148 = vmatprep.mubr.f32.mxu0 0.0
  %1149 = vmatmul.mubr.f32.gmra.mxu0 %v1082
  %v1150 = vpop.f32.mrf.mxu0
  %v1151 = vadd.f32 %v1079, %v1150
  %v1152 = vpop.f32.mrf.mxu0
  %1153 = vdwg.mxu0
  %v1154 = vmax.f32 %v1151, 0.0
  %v1155 = vlaneseq
  %v1156 = vshrl.u32 %v1155, 7
  %v1157 = vsub.s32 0, %v1156
  %v1158 = vrot.slane %v21, %v1157
  %v1159 = vmul.f32 %v1154, %v1158
  %v1160 = vsel %vm1080, %v1159, 0.0
  %1161 = vadd.xlane.f32.xlu0 %v1160
  %v1162 = vpop.xlane.xlu0 %1161
  %v1163 = vlaneseq
  %v1164 = vshrl.u32 %v1163, 7
  %v1165 = vsub.s32 0, %v1164
  %v1166 = vrot.slane %v22, %v1165
  %v1167 = vadd.f32 %v1162, %v1166
  %vm1168 = vcmask 7168
  %1169 = vst.msk [vmem:[%s2] sm:$0xff] %vm1168, %v1167
  // Predicated region
  $region10: #{encoder_conv1_forward.1} parent=0 // pred_check
    _
  $region11: #{encoder_conv1_forward.1} parent=0 // pred_check_branch
    %1171 = sbr.rel (0) target = $region13
  $region12: #{encoder_conv1_forward.1} parent=0 // pred_region
    _
  $region13: #{encoder_conv1_forward.1} parent=0 // pred_fallthru
    _
  // Predicated region
  $region14: #{encoder_conv1_forward.1} parent=0 // pred_check
    _
  $region15: #{encoder_conv1_forward.1} parent=0 // pred_check_branch
    %1173 = sbr.rel (0) target = $region17
  $region16: #{encoder_conv1_forward.1} parent=0 // pred_region
    _
  $region17: #{encoder_conv1_forward.1} parent=0 // pred_fallthru
    _

</llo_original>
